<compile_context>
chip_gen: v7x
topology: tpu7x:2x2x1
jax: 0.10.0
libtpu: 0.0.40
codegen_flags: <defaults>
</compile_context>

<pallas_src>
import jax
import jax.numpy as jnp
from jax.experimental import pallas as pl
from jax.experimental.pallas import tpu as pltpu

IN_DIM = 32      # in_dim of the Generator
HID = 128        # dense_1 output
OUT = 784        # dense_2 output (28*28)

MAX_BATCH_TILE = 1024   # bf16 out tile 1024*784*2 B ~= 1.6 MiB/buffer; safe on v7x


def _round_up(x, m):
    return (x + m - 1) // m * m


def _choose_batch_tile(batch):
    """Pick a batch tile: >=2-4 grid steps when batch allows (megacore +
    pipelining), 256-aligned for clean MXU M-passes, capped at MAX_BATCH_TILE.
    Small batches use a single full-array tile (always layout-legal)."""
    if batch >= 2048:
        return min(MAX_BATCH_TILE, _round_up(pl.cdiv(batch, 4), 256))
    if batch >= 512:
        return 256
    if batch >= 64:
        # at least 2 steps so v7x's second TensorCore is not idle
        return _round_up(pl.cdiv(batch, 2), 16)
    return batch


def generator_kernel(x_ref, w1_ref, b1_ref, w2_ref, b2_ref, o_ref):
    # Layer 1: Linear(IN_DIM, HID) + ReLU.
    # x arrives f32 (cast here, hidden under the DMA shadow); bf16 operands for
    # native MXU rate, f32 accumulation via preferred_element_type.
    x = x_ref[...].astype(jnp.bfloat16)
    h = jnp.dot(x, w1_ref[...], preferred_element_type=jnp.float32)
    h = jnp.maximum(h + b1_ref[...], 0.0)           # b1 (1, HID) broadcasts over batch

    # Layer 2: Linear(HID, OUT) + Sigmoid.
    y = jnp.dot(h.astype(jnp.bfloat16), w2_ref[...],
                preferred_element_type=jnp.float32)
    y = y + b2_ref[...]
    if o_ref.dtype == jnp.bfloat16:
        # bf16 epilogue: EUP sigmoid at bf16 rate on v6e/v7x, and the store
        # happens directly from the bf16 result (no extra f32 VMEM temp).
        y = y.astype(jnp.bfloat16)
    o_ref[...] = jax.nn.sigmoid(y).astype(o_ref.dtype)


def generator_forward(x, w1, b1, w2, b2, *, out_dtype=jnp.bfloat16):
    batch, in_dim = x.shape
    hid = w1.shape[1]
    out_dim = w2.shape[1]

    tb = _choose_batch_tile(batch)
    grid = pl.cdiv(batch, tb)   # partial trailing block masked by Pallas; no pad/slice pass

    # Weights should arrive pre-cast to bf16 (cast once at init); only cast here
    # if the caller passed f32. Biases stay f32, broadcast as (1, N).
    w1_bf = w1 if w1.dtype == jnp.bfloat16 else w1.astype(jnp.bfloat16)
    w2_bf = w2 if w2.dtype == jnp.bfloat16 else w2.astype(jnp.bfloat16)
    b1_f = jnp.asarray(b1, jnp.float32).reshape(1, hid)
    b2_f = jnp.asarray(b2, jnp.float32).reshape(1, out_dim)

    return pl.pallas_call(
        generator_kernel,
        out_shape=jax.ShapeDtypeStruct((batch, out_dim), out_dtype),
        grid_spec=pltpu.PrefetchScalarGridSpec(
            num_scalar_prefetch=0,
            grid=(grid,),
            in_specs=[
                pl.BlockSpec((tb, in_dim), lambda i: (i, 0)),     # x: tiled over batch
                pl.BlockSpec((in_dim, hid), lambda i: (0, 0)),    # weights/biases VMEM-resident
                pl.BlockSpec((1, hid), lambda i: (0, 0)),
                pl.BlockSpec((hid, out_dim), lambda i: (0, 0)),
                pl.BlockSpec((1, out_dim), lambda i: (0, 0)),
            ],
            out_specs=pl.BlockSpec((tb, out_dim), lambda i: (i, 0)),
        ),
        compiler_params=pltpu.CompilerParams(
            # Batch tiles are independent -> shard across v7x's two TensorCores.
            dimension_semantics=("parallel",),
        ),
    )(x, w1_bf, b1_f, w2_bf, b2_f)


def init_params(key):
    k1, k2 = jax.random.split(key)
    # nn.init.normal_(weight, std=0.01); bias = 0
    w1 = jax.random.normal(k1, (IN_DIM, HID), jnp.float32) * 0.01
    b1 = jnp.zeros((1, HID), jnp.float32)
    w2 = jax.random.normal(k2, (HID, OUT), jnp.float32) * 0.01
    b2 = jnp.zeros((1, OUT), jnp.float32)
    return w1, b1, w2, b2


if __name__ == "__main__":
    key = jax.random.PRNGKey(0)
    kx, kp = jax.random.split(key)

    batch = 8
    x = jax.random.normal(kx, (batch, IN_DIM), jnp.float32)
    w1, b1, w2, b2 = init_params(kp)

    # Pre-cast weights to bf16 ONCE (instead of per forward call).
    w1_bf = w1.astype(jnp.bfloat16)
    w2_bf = w2.astype(jnp.bfloat16)

    fwd = jax.jit(generator_forward, static_argnames=("out_dtype",))

    # Reference in plain JAX f32.
    ref = jax.nn.sigmoid(jnp.maximum(x @ w1 + b1, 0.0) @ w2 + b2)

    # Default path: bf16 output (halves the dominant HBM writeback stream).
    out_bf16 = fwd(x, w1_bf, b1, w2_bf, b2)
    jax.block_until_ready(out_bf16)
    assert out_bf16.shape == (batch, OUT)
    assert out_bf16.dtype == jnp.bfloat16
    assert jnp.allclose(out_bf16.astype(jnp.float32), ref, atol=1e-2, rtol=0.0)

    # Optional f32-output path (exact-parity-leaning callers).
    out_f32 = fwd(x, w1_bf, b1, w2_bf, b2, out_dtype=jnp.float32)
    jax.block_until_ready(out_f32)
    assert out_f32.dtype == jnp.float32
    assert jnp.allclose(out_f32, ref, atol=2e-3, rtol=0.0)

    print("KERNEL_OK")
</pallas_src>

<mosaic_0001>
module attributes {stable_mosaic.version = 11 : i64} {
  func.func @generator_kernel(%arg0: i32, %arg1: memref<8x32xf32, #tpu.memory_space<vmem>>, %arg2: memref<32x128xbf16, #tpu.memory_space<vmem>>, %arg3: memref<1x128xf32, #tpu.memory_space<vmem>>, %arg4: memref<128x784xbf16, #tpu.memory_space<vmem>>, %arg5: memref<1x784xf32, #tpu.memory_space<vmem>>, %arg6: memref<8x784xbf16, #tpu.memory_space<vmem>>) attributes {dimension_semantics = [#tpu.dimension_semantics<parallel>], iteration_bounds = array<i64: 1>, scalar_prefetch = 0 : i64, scratch_operands = 0 : i64, tpu.core_type = #tpu.core_type<tc>, window_params = [{transform_indices = @transform_0, window_bounds = array<i64: 8, 32>}, {pipeline_mode = #tpu.pipeline_mode<synchronous>, transform_indices = @transform_1, window_bounds = array<i64: 32, 128>}, {pipeline_mode = #tpu.pipeline_mode<synchronous>, transform_indices = @transform_2, window_bounds = array<i64: 1, 128>}, {pipeline_mode = #tpu.pipeline_mode<synchronous>, transform_indices = @transform_3, window_bounds = array<i64: 128, 784>}, {pipeline_mode = #tpu.pipeline_mode<synchronous>, transform_indices = @transform_4, window_bounds = array<i64: 1, 784>}, {transform_indices = @transform_5, window_bounds = array<i64: 8, 784>}]} {
    %c0 = arith.constant 0 : index
    %c0_0 = arith.constant 0 : index
    %0 = vector.load %arg1[%c0, %c0_0] : memref<8x32xf32, #tpu.memory_space<vmem>>, vector<8x32xf32>
    %1 = arith.truncf %0 : vector<8x32xf32> to vector<8x32xbf16>
    %c0_1 = arith.constant 0 : index
    %c0_2 = arith.constant 0 : index
    %2 = vector.load %arg2[%c0_1, %c0_2] : memref<32x128xbf16, #tpu.memory_space<vmem>>, vector<32x128xbf16>
    %cst = arith.constant dense<0.000000e+00> : vector<8x128xf32>
    %3 = tpu.matmul %1, %2, %cst {dimension_numbers = #tpu.dot_dimension_numbers<[1], [0], [0], [1], [0, 0, 1, 1], [], []>} : vector<8x32xbf16>, vector<32x128xbf16>, vector<8x128xf32> -> vector<8x128xf32>
    %c0_3 = arith.constant 0 : index
    %c0_4 = arith.constant 0 : index
    %4 = vector.load %arg3[%c0_3, %c0_4] : memref<1x128xf32, #tpu.memory_space<vmem>>, vector<1x128xf32>
    %5 = vector.broadcast %4 : vector<1x128xf32> to vector<8x128xf32>
    %6 = arith.addf %3, %5 : vector<8x128xf32>
    %cst_5 = arith.constant 0.000000e+00 : f32
    %7 = vector.broadcast %cst_5 : f32 to vector<8x128xf32>
    %8 = arith.maximumf %6, %7 : vector<8x128xf32>
    %9 = arith.truncf %8 : vector<8x128xf32> to vector<8x128xbf16>
    %c0_6 = arith.constant 0 : index
    %c0_7 = arith.constant 0 : index
    %10 = vector.load %arg4[%c0_6, %c0_7] : memref<128x784xbf16, #tpu.memory_space<vmem>>, vector<128x784xbf16>
    %cst_8 = arith.constant dense<0.000000e+00> : vector<8x784xf32>
    %11 = tpu.matmul %9, %10, %cst_8 {dimension_numbers = #tpu.dot_dimension_numbers<[1], [0], [0], [1], [0, 0, 1, 1], [], []>} : vector<8x128xbf16>, vector<128x784xbf16>, vector<8x784xf32> -> vector<8x784xf32>
    %c0_9 = arith.constant 0 : index
    %c0_10 = arith.constant 0 : index
    %12 = vector.load %arg5[%c0_9, %c0_10] : memref<1x784xf32, #tpu.memory_space<vmem>>, vector<1x784xf32>
    %13 = vector.broadcast %12 : vector<1x784xf32> to vector<8x784xf32>
    %14 = arith.addf %11, %13 : vector<8x784xf32>
    %15 = arith.truncf %14 : vector<8x784xf32> to vector<8x784xbf16>
    %16 = arith.negf %15 : vector<8x784xbf16>
    %17 = math.exp %16 : vector<8x784xbf16>
    %cst_11 = arith.constant 1.000000e+00 : bf16
    %18 = vector.broadcast %cst_11 : bf16 to vector<8x784xbf16>
    %19 = arith.addf %18, %17 : vector<8x784xbf16>
    %20 = arith.divf %18, %19 : vector<8x784xbf16>
    %c0_12 = arith.constant 0 : index
    %c0_13 = arith.constant 0 : index
    %21 = vector.load %arg6[%c0_12, %c0_13] : memref<8x784xbf16, #tpu.memory_space<vmem>>, vector<8x784xbf16>
    tpu.vector_store %arg6[%c0_12, %c0_13], %20 {strides = array<i32>} : memref<8x784xbf16, #tpu.memory_space<vmem>>, vector<8x784xbf16>,
    return
  }
  func.func @transform_0(%arg0: i32) -> (i32, i32) {
    %c0_i32 = arith.constant 0 : i32
    %c0_i32_0 = arith.constant 0 : i32
    return %arg0, %c0_i32 : i32, i32
  }
  func.func @transform_1(%arg0: i32) -> (i32, i32) {
    %c0_i32 = arith.constant 0 : i32
    %c0_i32_0 = arith.constant 0 : i32
    %c0_i32_1 = arith.constant 0 : i32
    return %c0_i32, %c0_i32_0 : i32, i32
  }
  func.func @transform_2(%arg0: i32) -> (i32, i32) {
    %c0_i32 = arith.constant 0 : i32
    %c0_i32_0 = arith.constant 0 : i32
    %c0_i32_1 = arith.constant 0 : i32
    return %c0_i32, %c0_i32_0 : i32, i32
  }
  func.func @transform_3(%arg0: i32) -> (i32, i32) {
    %c0_i32 = arith.constant 0 : i32
    %c0_i32_0 = arith.constant 0 : i32
    %c0_i32_1 = arith.constant 0 : i32
    return %c0_i32, %c0_i32_0 : i32, i32
  }
  func.func @transform_4(%arg0: i32) -> (i32, i32) {
    %c0_i32 = arith.constant 0 : i32
    %c0_i32_0 = arith.constant 0 : i32
    %c0_i32_1 = arith.constant 0 : i32
    return %c0_i32, %c0_i32_0 : i32, i32
  }
  func.func @transform_5(%arg0: i32) -> (i32, i32) {
    %c0_i32 = arith.constant 0 : i32
    %c0_i32_0 = arith.constant 0 : i32
    return %arg0, %c0_i32 : i32, i32
  }
}

</mosaic_0001>

<llo_original>
// kernel: generator_forward.1
$region0: #{generator_forward.1}
  #allocation0 [shape = 'u32[]', space=smem, size = 0x4, offset = 0x4, fixed_abs, tag = 'smem constant byte address 0x4 - core index']
  #allocation1 [shape = 'u32[144,128]{1,0:T(1,128)}', space=vmem, size = 0x12000, scoped, tag = 'internal scratch']
  %s0 = inlined_call_operand.vmem [shape: f32[8,32], index: 0, kind: input, shape index: {}]
  %s1 = inlined_call_operand.vmem [shape: bf16[32,128], index: 1, kind: input, shape index: {}]
  %s2 = inlined_call_operand.vmem [shape: f32[1,128], index: 2, kind: input, shape index: {}]
  %s3 = inlined_call_operand.vmem [shape: bf16[128,784], index: 3, kind: input, shape index: {}]
  %s4 = inlined_call_operand.vmem [shape: f32[1,784], index: 4, kind: input, shape index: {}]
  %s5 = inlined_call_operand.hbm [shape: bf16[8,784], index: 5, kind: output, shape index: {}]
  %s6 = sld [smem:[#allocation0]]
  $region30: #{generator_forward.1} parent=0
    _
  %s8 = ssub.s32 1, %s6
  %s9 = scalar_select 0, %s8, %s6
  $region1: #{generator_forward.1} parent=0
    #allocation2 [shape = 'u8[14336]{0}', space=vmem, size = 0x3800, scoped, tag = 'output window, operand 0, single buffered']
    #allocation3 [shape = 's32[1]{0}', space=sflag, size = 0x4, scoped, tag = 'scoped memory for generator_forward.1']
    %10 = vsyncpa [#allocation3], 0
    // Predicated region
    $region2: #{generator_forward.1} parent=1 // pred_check
      _
    $region3: #{generator_forward.1} parent=1 // pred_check_branch
      %12 = sbr.rel (0) target = $region5
    $region4: #{generator_forward.1} parent=1 // pred_region
      _
    $region5: #{generator_forward.1} parent=1 // pred_fallthru
      _
    // Predicated region
    $region6: #{generator_forward.1} parent=1 // pred_check
      _
    $region7: #{generator_forward.1} parent=1 // pred_check_branch
      %14 = sbr.rel (0) target = $region9
    $region8: #{generator_forward.1} parent=1 // pred_region
      _
    $region9: #{generator_forward.1} parent=1 // pred_fallthru
      _
    // Predicated region
    $region10: #{generator_forward.1} parent=1 // pred_check
      _
    $region11: #{generator_forward.1} parent=1 // pred_check_branch
      %16 = sbr.rel (0) target = $region13
    $region12: #{generator_forward.1} parent=1 // pred_region
      _
    $region13: #{generator_forward.1} parent=1 // pred_fallthru
      _
    // Predicated region
    $region14: #{generator_forward.1} parent=1 // pred_check
      _
    $region15: #{generator_forward.1} parent=1 // pred_check_branch
      %18 = sbr.rel (0) target = $region17
    $region16: #{generator_forward.1} parent=1 // pred_region
      _
    $region17: #{generator_forward.1} parent=1 // pred_fallthru
      _
    // Predicated region
    $region18: #{generator_forward.1} parent=1 // pred_check
      _
    $region19: #{generator_forward.1} parent=1 // pred_check_branch
      %20 = sbr.rel (0) target = $region21
    $region20: #{generator_forward.1} parent=1 // pred_region
      _
    $region21: #{generator_forward.1} parent=1 // pred_fallthru
      _
    %v23 = vld [vmem:[%s0] sm:$0xff]
    %v24 = vpack.c.bf16 %v23, %v23
    %v25 = vld [vmem:[%s1] sm:$0xf]
    %v26 = vld [vmem:[%s1 + $0x4] sm:$0xf]
    %v27 = vld [vmem:[%s1 + $0x8] sm:$0xf]
    %v28 = vld [vmem:[%s1 + $0xc] sm:$0xf]
    %v29 = vld [vmem:[%s2] sm:$0x1]
    %v31 = vlaneseq
    %v32 = vshrl.u32 %v31, 7
    %v33 = vsub.s32 0, %v32
    %v34 = vrot.slane %v29, %v33
    %v40 = vunpack.c.l.b16 %v25
    %v41 = vunpack.c.l.b16 %v26
    %v42 = vunpack.c.l.b16 %v27
    %v43 = vunpack.c.l.b16 %v28
    %v44 = vpack.c.b16 %v41, %v40
    %v45 = vpack.c.b16 %v43, %v42
    %vm48 = vcmask 261120
    %v50 = vsel %vm48, %v24, 0
    %52 = vmatprep.subr.bf16.mxu0 0
    %53 = vmatpush1.bf16.msra.mxu0 %v44
    %54 = vmatprep.subr.bf16.mxu0 0
    %55 = vmatpush1.bf16.msra.mxu0 %v45
    %56 = vmatprep.subr.bf16.mxu0 0
    %57 = vmatpush1.bf16.msra.mxu0 0
    %58 = vmatprep.subr.bf16.mxu0 0
    %59 = vmatpush1.bf16.msra.mxu0 0
    %60 = vmatprep.subr.bf16.mxu0 0
    %61 = vmatpush1.bf16.msra.mxu0 0
    %62 = vmatprep.subr.bf16.mxu0 0
    %63 = vmatpush1.bf16.msra.mxu0 0
    %64 = vmatprep.subr.bf16.mxu0 0
    %65 = vmatpush1.bf16.msra.mxu0 0
    %66 = vmatprep.subr.bf16.mxu0 0
    %67 = vmatpush1.bf16.msra.mxu0 0
    %68 = vmatprep.subr.bf16.mxu0 0
    %69 = vmatpush1.bf16.msra.mxu0 0
    %70 = vmatprep.subr.bf16.mxu0 0
    %71 = vmatpush1.bf16.msra.mxu0 0
    %72 = vmatprep.subr.bf16.mxu0 0
    %73 = vmatpush1.bf16.msra.mxu0 0
    %74 = vmatprep.subr.bf16.mxu0 0
    %75 = vmatpush1.bf16.msra.mxu0 0
    %76 = vmatprep.subr.bf16.mxu0 0
    %77 = vmatpush1.bf16.msra.mxu0 0
    %78 = vmatprep.subr.bf16.mxu0 0
    %79 = vmatpush1.bf16.msra.mxu0 0
    %80 = vmatprep.subr.bf16.mxu0 0
    %81 = vmatpush1.bf16.msra.mxu0 0
    %82 = vmatprep.subr.bf16.mxu0 0
    %83 = vmatpush1.bf16.msra.mxu0 0
    %84 = vmatprep.mubr.bf16.mxu0 0
    %85 = vmatmul.mubr.bf16.gmra.mrb[0].mxu0 %v50
    %v86 = vpop.f32.mrb[0].mxu0
    %v87 = vadd.f32 %v34, %v86
    %v88 = vpop.f32.mrb[0].mxu0
    %v89 = vpop.f32.mrb[0].mxu0
    %v90 = vpop.f32.mrb[0].mxu0
    %91 = vdwg.mxu0
    %v92 = vmax.f32 %v87, 0.0
    %v93 = vpack.c.bf16 %v92, %v92
    %v94 = vld [vmem:[%s3] sm:$0xff]
    %v95 = vld [vmem:[%s3 + $0x8] sm:$0xff]
    %v96 = vld [vmem:[%s3 + $0x10] sm:$0xff]
    %v97 = vld [vmem:[%s3 + $0x18] sm:$0xf]
    %v98 = vld [vmem:[%s3 + $0x1c] sm:$0xff]
    %v99 = vld [vmem:[%s3 + $0x24] sm:$0xff]
    %v100 = vld [vmem:[%s3 + $0x2c] sm:$0xff]
    %v101 = vld [vmem:[%s3 + $0x34] sm:$0xf]
    %v102 = vld [vmem:[%s3 + $0x38] sm:$0xff]
    %v103 = vld [vmem:[%s3 + $0x40] sm:$0xff]
    %v104 = vld [vmem:[%s3 + $0x48] sm:$0xff]
    %v105 = vld [vmem:[%s3 + $0x50] sm:$0xf]
    %v106 = vld [vmem:[%s3 + $0x54] sm:$0xff]
    %v107 = vld [vmem:[%s3 + $0x5c] sm:$0xff]
    %v108 = vld [vmem:[%s3 + $0x64] sm:$0xff]
    %v109 = vld [vmem:[%s3 + $0x6c] sm:$0xf]
    %v110 = vld [vmem:[%s3 + $0x70] sm:$0xff]
    %v111 = vld [vmem:[%s3 + $0x78] sm:$0xff]
    %v112 = vld [vmem:[%s3 + $0x80] sm:$0xff]
    %v113 = vld [vmem:[%s3 + $0x88] sm:$0xf]
    %v114 = vld [vmem:[%s3 + $0x8c] sm:$0xff]
    %v115 = vld [vmem:[%s3 + $0x94] sm:$0xff]
    %v116 = vld [vmem:[%s3 + $0x9c] sm:$0xff]
    %v117 = vld [vmem:[%s3 + $0xa4] sm:$0xf]
    %v118 = vld [vmem:[%s3 + $0xa8] sm:$0xff]
    %v119 = vld [vmem:[%s3 + $0xb0] sm:$0xff]
    %v120 = vld [vmem:[%s3 + $0xb8] sm:$0xff]
    %v121 = vld [vmem:[%s3 + $0xc0] sm:$0xf]
    %v122 = vld [vmem:[%s3 + $0xc4] sm:$0xff]
    %v123 = vld [vmem:[%s3 + $0xcc] sm:$0xff]
    %v124 = vld [vmem:[%s3 + $0xd4] sm:$0xff]
    %v125 = vld [vmem:[%s3 + $0xdc] sm:$0xf]
    %v126 = vld [vmem:[%s3 + $0xe0] sm:$0xff]
    %v127 = vld [vmem:[%s3 + $0xe8] sm:$0xff]
    %v128 = vld [vmem:[%s3 + $0xf0] sm:$0xff]
    %v129 = vld [vmem:[%s3 + $0xf8] sm:$0xf]
    %v130 = vld [vmem:[%s3 + $0xfc] sm:$0xff]
    %v131 = vld [vmem:[%s3 + $0x104] sm:$0xff]
    %v132 = vld [vmem:[%s3 + $0x10c] sm:$0xff]
    %v133 = vld [vmem:[%s3 + $0x114] sm:$0xf]
    %v134 = vld [vmem:[%s3 + $0x118] sm:$0xff]
    %v135 = vld [vmem:[%s3 + $0x120] sm:$0xff]
    %v136 = vld [vmem:[%s3 + $0x128] sm:$0xff]
    %v137 = vld [vmem:[%s3 + $0x130] sm:$0xf]
    %v138 = vld [vmem:[%s3 + $0x134] sm:$0xff]
    %v139 = vld [vmem:[%s3 + $0x13c] sm:$0xff]
    %v140 = vld [vmem:[%s3 + $0x144] sm:$0xff]
    %v141 = vld [vmem:[%s3 + $0x14c] sm:$0xf]
    %v142 = vld [vmem:[%s3 + $0x150] sm:$0xff]
    %v143 = vld [vmem:[%s3 + $0x158] sm:$0xff]
    %v144 = vld [vmem:[%s3 + $0x160] sm:$0xff]
    %v145 = vld [vmem:[%s3 + $0x168] sm:$0xf]
    %v146 = vld [vmem:[%s3 + $0x16c] sm:$0xff]
    %v147 = vld [vmem:[%s3 + $0x174] sm:$0xff]
    %v148 = vld [vmem:[%s3 + $0x17c] sm:$0xff]
    %v149 = vld [vmem:[%s3 + $0x184] sm:$0xf]
    %v150 = vld [vmem:[%s3 + $0x188] sm:$0xff]
    %v151 = vld [vmem:[%s3 + $0x190] sm:$0xff]
    %v152 = vld [vmem:[%s3 + $0x198] sm:$0xff]
    %v153 = vld [vmem:[%s3 + $0x1a0] sm:$0xf]
    %v154 = vld [vmem:[%s3 + $0x1a4] sm:$0xff]
    %v155 = vld [vmem:[%s3 + $0x1ac] sm:$0xff]
    %v156 = vld [vmem:[%s3 + $0x1b4] sm:$0xff]
    %v157 = vld [vmem:[%s3 + $0x1bc] sm:$0xf]
    %v158 = vld [vmem:[%s4] sm:$0x7f]
    %v160 = vlaneseq
    %v161 = vshrl.u32 %v160, 7
    %v162 = vsub.s32 0, %v161
    %v163 = vrot.slane %v158, %v162
    %v164 = vlaneseq
    %v165 = vshrl.u32 %v164, 7
    %v166 = vsub.s32 1, %v165
    %v167 = vrot.slane %v158, %v166
    %v168 = vlaneseq
    %v169 = vshrl.u32 %v168, 7
    %v170 = vsub.s32 2, %v169
    %v171 = vrot.slane %v158, %v170
    %v172 = vlaneseq
    %v173 = vshrl.u32 %v172, 7
    %v174 = vsub.s32 3, %v173
    %v175 = vrot.slane %v158, %v174
    %v176 = vlaneseq
    %v177 = vshrl.u32 %v176, 7
    %v178 = vsub.s32 4, %v177
    %v179 = vrot.slane %v158, %v178
    %v180 = vlaneseq
    %v181 = vshrl.u32 %v180, 7
    %v182 = vsub.s32 5, %v181
    %v183 = vrot.slane %v158, %v182
    %v184 = vlaneseq
    %v185 = vshrl.u32 %v184, 7
    %v186 = vsub.s32 6, %v185
    %v187 = vrot.slane %v158, %v186
    %v259 = vunpack.c.l.b16 %v94
    %v260 = vunpack.c.h.b16 %v94
    %v261 = vunpack.c.l.b16 %v95
    %v262 = vunpack.c.h.b16 %v95
    %v263 = vunpack.c.l.b16 %v96
    %v264 = vunpack.c.h.b16 %v96
    %v265 = vunpack.c.l.b16 %v97
    %v266 = vunpack.c.l.b16 %v98
    %v267 = vunpack.c.h.b16 %v98
    %v268 = vunpack.c.l.b16 %v99
    %v269 = vunpack.c.h.b16 %v99
    %v270 = vunpack.c.l.b16 %v100
    %v271 = vunpack.c.h.b16 %v100
    %v272 = vunpack.c.l.b16 %v101
    %v273 = vunpack.c.l.b16 %v102
    %v274 = vunpack.c.h.b16 %v102
    %v275 = vunpack.c.l.b16 %v103
    %v276 = vunpack.c.h.b16 %v103
    %v277 = vunpack.c.l.b16 %v104
    %v278 = vunpack.c.h.b16 %v104
    %v279 = vunpack.c.l.b16 %v105
    %v280 = vunpack.c.l.b16 %v106
    %v281 = vunpack.c.h.b16 %v106
    %v282 = vunpack.c.l.b16 %v107
    %v283 = vunpack.c.h.b16 %v107
    %v284 = vunpack.c.l.b16 %v108
    %v285 = vunpack.c.h.b16 %v108
    %v286 = vunpack.c.l.b16 %v109
    %v287 = vunpack.c.l.b16 %v110
    %v288 = vunpack.c.h.b16 %v110
    %v289 = vunpack.c.l.b16 %v111
    %v290 = vunpack.c.h.b16 %v111
    %v291 = vunpack.c.l.b16 %v112
    %v292 = vunpack.c.h.b16 %v112
    %v293 = vunpack.c.l.b16 %v113
    %v294 = vunpack.c.l.b16 %v114
    %v295 = vunpack.c.h.b16 %v114
    %v296 = vunpack.c.l.b16 %v115
    %v297 = vunpack.c.h.b16 %v115
    %v298 = vunpack.c.l.b16 %v116
    %v299 = vunpack.c.h.b16 %v116
    %v300 = vunpack.c.l.b16 %v117
    %v301 = vunpack.c.l.b16 %v118
    %v302 = vunpack.c.h.b16 %v118
    %v303 = vunpack.c.l.b16 %v119
    %v304 = vunpack.c.h.b16 %v119
    %v305 = vunpack.c.l.b16 %v120
    %v306 = vunpack.c.h.b16 %v120
    %v307 = vunpack.c.l.b16 %v121
    %v308 = vunpack.c.l.b16 %v122
    %v309 = vunpack.c.h.b16 %v122
    %v310 = vunpack.c.l.b16 %v123
    %v311 = vunpack.c.h.b16 %v123
    %v312 = vunpack.c.l.b16 %v124
    %v313 = vunpack.c.h.b16 %v124
    %v314 = vunpack.c.l.b16 %v125
    %v315 = vunpack.c.l.b16 %v126
    %v316 = vunpack.c.h.b16 %v126
    %v317 = vunpack.c.l.b16 %v127
    %v318 = vunpack.c.h.b16 %v127
    %v319 = vunpack.c.l.b16 %v128
    %v320 = vunpack.c.h.b16 %v128
    %v321 = vunpack.c.l.b16 %v129
    %v322 = vunpack.c.l.b16 %v130
    %v323 = vunpack.c.h.b16 %v130
    %v324 = vunpack.c.l.b16 %v131
    %v325 = vunpack.c.h.b16 %v131
    %v326 = vunpack.c.l.b16 %v132
    %v327 = vunpack.c.h.b16 %v132
    %v328 = vunpack.c.l.b16 %v133
    %v329 = vunpack.c.l.b16 %v134
    %v330 = vunpack.c.h.b16 %v134
    %v331 = vunpack.c.l.b16 %v135
    %v332 = vunpack.c.h.b16 %v135
    %v333 = vunpack.c.l.b16 %v136
    %v334 = vunpack.c.h.b16 %v136
    %v335 = vunpack.c.l.b16 %v137
    %v336 = vunpack.c.l.b16 %v138
    %v337 = vunpack.c.h.b16 %v138
    %v338 = vunpack.c.l.b16 %v139
    %v339 = vunpack.c.h.b16 %v139
    %v340 = vunpack.c.l.b16 %v140
    %v341 = vunpack.c.h.b16 %v140
    %v342 = vunpack.c.l.b16 %v141
    %v343 = vunpack.c.l.b16 %v142
    %v344 = vunpack.c.h.b16 %v142
    %v345 = vunpack.c.l.b16 %v143
    %v346 = vunpack.c.h.b16 %v143
    %v347 = vunpack.c.l.b16 %v144
    %v348 = vunpack.c.h.b16 %v144
    %v349 = vunpack.c.l.b16 %v145
    %v350 = vunpack.c.l.b16 %v146
    %v351 = vunpack.c.h.b16 %v146
    %v352 = vunpack.c.l.b16 %v147
    %v353 = vunpack.c.h.b16 %v147
    %v354 = vunpack.c.l.b16 %v148
    %v355 = vunpack.c.h.b16 %v148
    %v356 = vunpack.c.l.b16 %v149
    %v357 = vunpack.c.l.b16 %v150
    %v358 = vunpack.c.h.b16 %v150
    %v359 = vunpack.c.l.b16 %v151
    %v360 = vunpack.c.h.b16 %v151
    %v361 = vunpack.c.l.b16 %v152
    %v362 = vunpack.c.h.b16 %v152
    %v363 = vunpack.c.l.b16 %v153
    %v364 = vunpack.c.l.b16 %v154
    %v365 = vunpack.c.h.b16 %v154
    %v366 = vunpack.c.l.b16 %v155
    %v367 = vunpack.c.h.b16 %v155
    %v368 = vunpack.c.l.b16 %v156
    %v369 = vunpack.c.h.b16 %v156
    %v370 = vunpack.c.l.b16 %v157
    %v371 = vpack.c.b16 %v266, %v259
    %v372 = vpack.c.b16 %v267, %v260
    %v373 = vpack.c.b16 %v268, %v261
    %v374 = vpack.c.b16 %v269, %v262
    %v375 = vpack.c.b16 %v270, %v263
    %v376 = vpack.c.b16 %v271, %v264
    %v377 = vpack.c.b16 %v272, %v265
    %v378 = vpack.c.b16 %v280, %v273
    %v379 = vpack.c.b16 %v281, %v274
    %v380 = vpack.c.b16 %v282, %v275
    %v381 = vpack.c.b16 %v283, %v276
    %v382 = vpack.c.b16 %v284, %v277
    %v383 = vpack.c.b16 %v285, %v278
    %v384 = vpack.c.b16 %v286, %v279
    %v385 = vpack.c.b16 %v294, %v287
    %v386 = vpack.c.b16 %v295, %v288
    %v387 = vpack.c.b16 %v296, %v289
    %v388 = vpack.c.b16 %v297, %v290
    %v389 = vpack.c.b16 %v298, %v291
    %v390 = vpack.c.b16 %v299, %v292
    %v391 = vpack.c.b16 %v300, %v293
    %v392 = vpack.c.b16 %v308, %v301
    %v393 = vpack.c.b16 %v309, %v302
    %v394 = vpack.c.b16 %v310, %v303
    %v395 = vpack.c.b16 %v311, %v304
    %v396 = vpack.c.b16 %v312, %v305
    %v397 = vpack.c.b16 %v313, %v306
    %v398 = vpack.c.b16 %v314, %v307
    %v399 = vpack.c.b16 %v322, %v315
    %v400 = vpack.c.b16 %v323, %v316
    %v401 = vpack.c.b16 %v324, %v317
    %v402 = vpack.c.b16 %v325, %v318
    %v403 = vpack.c.b16 %v326, %v319
    %v404 = vpack.c.b16 %v327, %v320
    %v405 = vpack.c.b16 %v328, %v321
    %v406 = vpack.c.b16 %v336, %v329
    %v407 = vpack.c.b16 %v337, %v330
    %v408 = vpack.c.b16 %v338, %v331
    %v409 = vpack.c.b16 %v339, %v332
    %v410 = vpack.c.b16 %v340, %v333
    %v411 = vpack.c.b16 %v341, %v334
    %v412 = vpack.c.b16 %v342, %v335
    %v413 = vpack.c.b16 %v350, %v343
    %v414 = vpack.c.b16 %v351, %v344
    %v415 = vpack.c.b16 %v352, %v345
    %v416 = vpack.c.b16 %v353, %v346
    %v417 = vpack.c.b16 %v354, %v347
    %v418 = vpack.c.b16 %v355, %v348
    %v419 = vpack.c.b16 %v356, %v349
    %v420 = vpack.c.b16 %v364, %v357
    %v421 = vpack.c.b16 %v365, %v358
    %v422 = vpack.c.b16 %v366, %v359
    %v423 = vpack.c.b16 %v367, %v360
    %v424 = vpack.c.b16 %v368, %v361
    %v425 = vpack.c.b16 %v369, %v362
    %v426 = vpack.c.b16 %v370, %v363
    %483 = vmatprep.subr.bf16.mxu0 %v372
    %484 = vmatpush1.bf16.msra.mxu0 %v371
    %485 = vmatprep.subr.bf16.mxu0 %v379
    %486 = vmatpush1.bf16.msra.mxu0 %v378
    %487 = vmatprep.subr.bf16.mxu0 %v386
    %488 = vmatpush1.bf16.msra.mxu0 %v385
    %489 = vmatprep.subr.bf16.mxu0 %v393
    %490 = vmatpush1.bf16.msra.mxu0 %v392
    %491 = vmatprep.subr.bf16.mxu0 %v400
    %492 = vmatpush1.bf16.msra.mxu0 %v399
    %493 = vmatprep.subr.bf16.mxu0 %v407
    %494 = vmatpush1.bf16.msra.mxu0 %v406
    %495 = vmatprep.subr.bf16.mxu0 %v414
    %496 = vmatpush1.bf16.msra.mxu0 %v413
    %497 = vmatprep.subr.bf16.mxu0 %v421
    %498 = vmatpush1.bf16.msra.mxu0 %v420
    %499 = vmatprep.subr.bf16.mxu0 0
    %500 = vmatpush1.bf16.msra.mxu0 0
    %501 = vmatprep.subr.bf16.mxu0 0
    %502 = vmatpush1.bf16.msra.mxu0 0
    %503 = vmatprep.subr.bf16.mxu0 0
    %504 = vmatpush1.bf16.msra.mxu0 0
    %505 = vmatprep.subr.bf16.mxu0 0
    %506 = vmatpush1.bf16.msra.mxu0 0
    %507 = vmatprep.subr.bf16.mxu0 0
    %508 = vmatpush1.bf16.msra.mxu0 0
    %509 = vmatprep.subr.bf16.mxu0 0
    %510 = vmatpush1.bf16.msra.mxu0 0
    %511 = vmatprep.subr.bf16.mxu0 0
    %512 = vmatpush1.bf16.msra.mxu0 0
    %513 = vmatprep.subr.bf16.mxu0 0
    %514 = vmatpush1.bf16.msra.mxu0 0
    %515 = vmatprep.mubr.bf16.mxu0 0
    %516 = vmatmul.mubr.bf16.gmra.mrb[0].mxu0 %v93
    %v517 = vpop.f32.mrb[0].mxu0
    %v518 = vadd.f32 %v163, %v517
    %v519 = vpop.f32.mrb[0].mxu0
    %v520 = vadd.f32 %v167, %v519
    %v521 = vpop.f32.mrb[0].mxu0
    %v522 = vpop.f32.mrb[0].mxu0
    %523 = vdwg.mxu0
    %524 = vmatprep.subr.bf16.mxu0 %v374
    %525 = vmatpush1.bf16.msra.mxu0 %v373
    %526 = vmatprep.subr.bf16.mxu0 %v381
    %527 = vmatpush1.bf16.msra.mxu0 %v380
    %528 = vmatprep.subr.bf16.mxu0 %v388
    %529 = vmatpush1.bf16.msra.mxu0 %v387
    %530 = vmatprep.subr.bf16.mxu0 %v395
    %531 = vmatpush1.bf16.msra.mxu0 %v394
    %532 = vmatprep.subr.bf16.mxu0 %v402
    %533 = vmatpush1.bf16.msra.mxu0 %v401
    %534 = vmatprep.subr.bf16.mxu0 %v409
    %535 = vmatpush1.bf16.msra.mxu0 %v408
    %536 = vmatprep.subr.bf16.mxu0 %v416
    %537 = vmatpush1.bf16.msra.mxu0 %v415
    %538 = vmatprep.subr.bf16.mxu0 %v423
    %539 = vmatpush1.bf16.msra.mxu0 %v422
    %540 = vmatprep.subr.bf16.mxu0 0
    %541 = vmatpush1.bf16.msra.mxu0 0
    %542 = vmatprep.subr.bf16.mxu0 0
    %543 = vmatpush1.bf16.msra.mxu0 0
    %544 = vmatprep.subr.bf16.mxu0 0
    %545 = vmatpush1.bf16.msra.mxu0 0
    %546 = vmatprep.subr.bf16.mxu0 0
    %547 = vmatpush1.bf16.msra.mxu0 0
    %548 = vmatprep.subr.bf16.mxu0 0
    %549 = vmatpush1.bf16.msra.mxu0 0
    %550 = vmatprep.subr.bf16.mxu0 0
    %551 = vmatpush1.bf16.msra.mxu0 0
    %552 = vmatprep.subr.bf16.mxu0 0
    %553 = vmatpush1.bf16.msra.mxu0 0
    %554 = vmatprep.subr.bf16.mxu0 0
    %555 = vmatpush1.bf16.msra.mxu0 0
    %556 = vmatprep.mubr.bf16.mxu0 0
    %557 = vmatmul.mubr.bf16.gmra.mrb[0].mxu0 %v93
    %v558 = vpop.f32.mrb[0].mxu0
    %v559 = vadd.f32 %v171, %v558
    %v560 = vpop.f32.mrb[0].mxu0
    %v561 = vadd.f32 %v175, %v560
    %v562 = vpop.f32.mrb[0].mxu0
    %v563 = vpop.f32.mrb[0].mxu0
    %564 = vdwg.mxu0
    %565 = vmatprep.subr.bf16.mxu0 %v376
    %566 = vmatpush1.bf16.msra.mxu0 %v375
    %567 = vmatprep.subr.bf16.mxu0 %v383
    %568 = vmatpush1.bf16.msra.mxu0 %v382
    %569 = vmatprep.subr.bf16.mxu0 %v390
    %570 = vmatpush1.bf16.msra.mxu0 %v389
    %571 = vmatprep.subr.bf16.mxu0 %v397
    %572 = vmatpush1.bf16.msra.mxu0 %v396
    %573 = vmatprep.subr.bf16.mxu0 %v404
    %574 = vmatpush1.bf16.msra.mxu0 %v403
    %575 = vmatprep.subr.bf16.mxu0 %v411
    %576 = vmatpush1.bf16.msra.mxu0 %v410
    %577 = vmatprep.subr.bf16.mxu0 %v418
    %578 = vmatpush1.bf16.msra.mxu0 %v417
    %579 = vmatprep.subr.bf16.mxu0 %v425
    %580 = vmatpush1.bf16.msra.mxu0 %v424
    %581 = vmatprep.subr.bf16.mxu0 0
    %582 = vmatpush1.bf16.msra.mxu0 0
    %583 = vmatprep.subr.bf16.mxu0 0
    %584 = vmatpush1.bf16.msra.mxu0 0
    %585 = vmatprep.subr.bf16.mxu0 0
    %586 = vmatpush1.bf16.msra.mxu0 0
    %587 = vmatprep.subr.bf16.mxu0 0
    %588 = vmatpush1.bf16.msra.mxu0 0
    %589 = vmatprep.subr.bf16.mxu0 0
    %590 = vmatpush1.bf16.msra.mxu0 0
    %591 = vmatprep.subr.bf16.mxu0 0
    %592 = vmatpush1.bf16.msra.mxu0 0
    %593 = vmatprep.subr.bf16.mxu0 0
    %594 = vmatpush1.bf16.msra.mxu0 0
    %595 = vmatprep.subr.bf16.mxu0 0
    %596 = vmatpush1.bf16.msra.mxu0 0
    %597 = vmatprep.mubr.bf16.mxu0 0
    %598 = vmatmul.mubr.bf16.gmra.mrb[0].mxu0 %v93
    %v599 = vpop.f32.mrb[0].mxu0
    %v600 = vadd.f32 %v179, %v599
    %v601 = vpop.f32.mrb[0].mxu0
    %v602 = vadd.f32 %v183, %v601
    %v603 = vpop.f32.mrb[0].mxu0
    %v604 = vpop.f32.mrb[0].mxu0
    %605 = vdwg.mxu0
    %606 = vmatprep.subr.bf16.mxu0 0
    %607 = vmatpush1.bf16.msra.mxu0 %v377
    %608 = vmatprep.subr.bf16.mxu0 0
    %609 = vmatpush1.bf16.msra.mxu0 %v384
    %610 = vmatprep.subr.bf16.mxu0 0
    %611 = vmatpush1.bf16.msra.mxu0 %v391
    %612 = vmatprep.subr.bf16.mxu0 0
    %613 = vmatpush1.bf16.msra.mxu0 %v398
    %614 = vmatprep.subr.bf16.mxu0 0
    %615 = vmatpush1.bf16.msra.mxu0 %v405
    %616 = vmatprep.subr.bf16.mxu0 0
    %617 = vmatpush1.bf16.msra.mxu0 %v412
    %618 = vmatprep.subr.bf16.mxu0 0
    %619 = vmatpush1.bf16.msra.mxu0 %v419
    %620 = vmatprep.subr.bf16.mxu0 0
    %621 = vmatpush1.bf16.msra.mxu0 %v426
    %622 = vmatprep.subr.bf16.mxu0 0
    %623 = vmatpush1.bf16.msra.mxu0 0
    %624 = vmatprep.subr.bf16.mxu0 0
    %625 = vmatpush1.bf16.msra.mxu0 0
    %626 = vmatprep.subr.bf16.mxu0 0
    %627 = vmatpush1.bf16.msra.mxu0 0
    %628 = vmatprep.subr.bf16.mxu0 0
    %629 = vmatpush1.bf16.msra.mxu0 0
    %630 = vmatprep.subr.bf16.mxu0 0
    %631 = vmatpush1.bf16.msra.mxu0 0
    %632 = vmatprep.subr.bf16.mxu0 0
    %633 = vmatpush1.bf16.msra.mxu0 0
    %634 = vmatprep.subr.bf16.mxu0 0
    %635 = vmatpush1.bf16.msra.mxu0 0
    %636 = vmatprep.subr.bf16.mxu0 0
    %637 = vmatpush1.bf16.msra.mxu0 0
    %638 = vmatprep.mubr.bf16.mxu0 0
    %639 = vmatmul.mubr.bf16.gmra.mrb[0].mxu0 %v93
    %v640 = vpop.f32.mrb[0].mxu0
    %v641 = vadd.f32 %v187, %v640
    %v642 = vpop.f32.mrb[0].mxu0
    %v643 = vpop.f32.mrb[0].mxu0
    %v644 = vpop.f32.mrb[0].mxu0
    %645 = vdwg.mxu0
    %v646 = vpack.c.bf16 %v518, %v518
    %v647 = vpack.c.bf16 %v520, %v520
    %v648 = vpack.c.bf16 %v559, %v559
    %v649 = vpack.c.bf16 %v561, %v561
    %v650 = vpack.c.bf16 %v600, %v600
    %v651 = vpack.c.bf16 %v602, %v602
    %v652 = vpack.c.bf16 %v641, %v641
    %v653 = vxor.u32 %v646, 2147516416
    %v654 = vxor.u32 %v647, 2147516416
    %v655 = vxor.u32 %v648, 2147516416
    %v656 = vxor.u32 %v649, 2147516416
    %v657 = vxor.u32 %v650, 2147516416
    %v658 = vxor.u32 %v651, 2147516416
    %v659 = vxor.u32 %v652, 2147516416
    %v661 = vmul.bf16 %v653, 1069105081
    %v662 = vpow.bf16.pop %v661
    %v664 = vmul.bf16 %v654, 1069105081
    %v665 = vpow.bf16.pop %v664
    %v667 = vmul.bf16 %v655, 1069105081
    %v668 = vpow.bf16.pop %v667
    %v670 = vmul.bf16 %v656, 1069105081
    %v671 = vpow.bf16.pop %v670
    %v673 = vmul.bf16 %v657, 1069105081
    %v674 = vpow.bf16.pop %v673
    %v676 = vmul.bf16 %v658, 1069105081
    %v677 = vpow.bf16.pop %v676
    %v679 = vmul.bf16 %v659, 1069105081
    %v680 = vpow.bf16.pop %v679
    %v681 = vadd.bf16 %v662, 1065369472
    %v682 = vadd.bf16 %v665, 1065369472
    %v683 = vadd.bf16 %v668, 1065369472
    %v684 = vadd.bf16 %v671, 1065369472
    %v685 = vadd.bf16 %v674, 1065369472
    %v686 = vadd.bf16 %v677, 1065369472
    %v687 = vadd.bf16 %v680, 1065369472
    %v688 = vrcp.bf16.pop %v681
    %v689 = vmul.bf16 1065369472, %v688
    %v690 = vrcp.bf16.pop %v682
    %v691 = vmul.bf16 1065369472, %v690
    %v692 = vrcp.bf16.pop %v683
    %v693 = vmul.bf16 1065369472, %v692
    %v694 = vrcp.bf16.pop %v684
    %v695 = vmul.bf16 1065369472, %v694
    %v696 = vrcp.bf16.pop %v685
    %v697 = vmul.bf16 1065369472, %v696
    %v698 = vrcp.bf16.pop %v686
    %v699 = vmul.bf16 1065369472, %v698
    %v700 = vrcp.bf16.pop %v687
    %v701 = vmul.bf16 1065369472, %v700
    %v709 = vunpack.c.l.b16 %v689
    %v710 = vunpack.c.l.b16 %v691
    %v711 = vunpack.c.l.b16 %v693
    %v712 = vunpack.c.l.b16 %v695
    %v713 = vunpack.c.l.b16 %v697
    %v714 = vunpack.c.l.b16 %v699
    %v715 = vunpack.c.l.b16 %v701
    %v716 = vpack.c.b16 %v710, %v709
    %v717 = vpack.c.b16 %v712, %v711
    %v718 = vpack.c.b16 %v714, %v713
    %v719 = vpack.c.b16 %v715, %v715
    %724 = vst [vmem:[#allocation2] sm:$0xff] %v716
    %725 = vst [vmem:[#allocation2 + $0x8] sm:$0xff] %v717
    %726 = vst [vmem:[#allocation2 + $0x10] sm:$0xff] %v718
    %vm727 = vcmask 125952
    %728 = vst.msk [vmem:[#allocation2 + $0x18] sm:$0xf] %vm727, %v719
    // Predicated region
    $region22: #{generator_forward.1} parent=1 // pred_check
      _
    $region23: #{generator_forward.1} parent=1 // pred_check_branch
      %730 = sbr.rel (0) target = $region25
    $region24: #{generator_forward.1} parent=1 // pred_region
      %s732 = ssub.s32 448, 448
      %733 = vsyncadd [#allocation3], %s732
      %s735 = sshll.u32 [#allocation2], 4
      %s736 = int_to_ptr.vmem [resolvable:$true] %s735
      %738 = dma.vmem_to_hbm [thread:$0]  %s736, 448, %s5, [#allocation3]
    $region25: #{generator_forward.1} parent=1 // pred_fallthru
      _
    // Predicated region
    $region26: #{generator_forward.1} parent=1 // pred_check
      _
    $region27: #{generator_forward.1} parent=1 // pred_check_branch
      %740 = sbr.rel (0) target = $region29
    $region28: #{generator_forward.1} parent=1 // pred_region
      %741 = dma.done [#allocation3], 448
    $region29: #{generator_forward.1} parent=1 // pred_fallthru
      _
    %742 = vsyncpa [#allocation3], 1

</llo_original>
